<compile_context>
chip_gen: v6e
topology: v6e:2x2x1
jax: 0.10.0
libtpu: 0.0.40
codegen_flags: <defaults>
</compile_context>

<pallas_src>
import jax
import jax.numpy as jnp
from jax import lax
from jax.experimental import pallas as pl
from jax.experimental.pallas import tpu as pltpu


def _round_up(x, m):
    return ((x + m - 1) // m) * m


def _pick_token_block(s_pad, block_tokens):
    """Largest multiple of 8 that divides s_pad and is <= block_tokens."""
    best = 8
    t = 8
    limit = min(s_pad, max(block_tokens, 8))
    while t <= limit:
        if s_pad % t == 0:
            best = t
        t += 8
    return best


def _bert_emb_kernel(tok_ids_ref,    # SMEM (B, S_pad) int32   (scalar prefetch)
                     seg_ref,        # VMEM (T, 1) f32 block: token-type ids
                     tok_tab_ref,    # VMEM (V, D) token table, resident
                     seg0_ref,       # VMEM (1, D) seg_table[0]
                     seg1_ref,       # VMEM (1, D) seg_table[1]
                     pos_ref,        # VMEM (S_pad, D) position slab, resident
                     out_ref,        # VMEM (T, D) output tile
                     tok_rows_ref):  # VMEM (T, D) f32 scratch (gathered token rows)
    b = pl.program_id(0)
    s = pl.program_id(1)
    tq, _ = out_ref.shape
    base = pl.multiple_of(s * tq, tq)

    # --- 1) Token-row gather: the only remaining per-row work.  8 rows per
    #        iteration, unrolled, stored as full (8, D) slabs to VMEM scratch. ---
    n_groups = tq // 8

    def gather_group(g, carry):
        r = pl.multiple_of(g * 8, 8)
        rows = [
            tok_tab_ref[pl.ds(tok_ids_ref[b, base + r + j], 1), :].astype(jnp.float32)
            for j in range(8)
        ]
        tok_rows_ref[pl.ds(r, 8), :] = jnp.concatenate(rows, axis=0)
        return carry

    lax.fori_loop(0, n_groups, gather_group, 0, unroll=min(8, n_groups))

    # --- 2) Segment (binary blend, exact) + position (contiguous slice):
    #        one vectorized f32 pass over the (T, D) tile. ---
    sid = seg_ref[...]                                                  # (T, 1) in {0,1}
    seg = seg0_ref[...] * (1.0 - sid) + seg1_ref[...] * sid             # (T, D)
    pos = pos_ref[pl.ds(base, tq), :].astype(jnp.float32)               # (T, D)
    out_ref[...] = (tok_rows_ref[...] + seg + pos).astype(out_ref.dtype)


def bert_emb_forward(input_ids, token_type_ids, tok_table, seg_table, pos_table,
                     *, block_tokens=256):
    """Pallas equivalent of BertEmb.forward(input_ids, token_type_ids) (eval mode)."""
    B, S = input_ids.shape
    V, D = tok_table.shape
    Vs, Ds = seg_table.shape
    L, Dp = pos_table.shape
    assert D == Ds == Dp, "d_model mismatch between embedding tables"
    assert S <= L, "sequence length exceeds max position embeddings"

    out_dtype = tok_table.dtype
    S_pad = _round_up(S, 8)
    T = _pick_token_block(S_pad, block_tokens)
    n_s = S_pad // T

    # Clamp ids so a bad id can never drive an OOB access; token types binary.
    tok_ids = jnp.clip(input_ids.astype(jnp.int32), 0, V - 1)
    seg_ids = jnp.clip(token_type_ids.astype(jnp.int32), 0, min(Vs, 2) - 1)

    pad = S_pad - S
    if pad:
        tok_ids = jnp.pad(tok_ids, ((0, 0), (0, pad)))
        seg_ids = jnp.pad(seg_ids, ((0, 0), (0, pad)))

    seg_f = seg_ids.astype(jnp.float32)[..., None]                      # (B, S_pad, 1)

    # Tiny precomputed operands (f32): the 2 used segment rows + position slab.
    seg0 = seg_table[0:1].astype(jnp.float32)                           # (1, D)
    seg1 = (seg_table[1:2] if Vs > 1 else seg_table[0:1]).astype(jnp.float32)
    pos_used = pos_table[:S].astype(jnp.float32)                        # (S, D)
    if pad:
        pos_used = jnp.pad(pos_used, ((0, pad), (0, 0)))                # (S_pad, D)

    # Explicit VMEM budget: resident operands (single copy) + pipelined tiles.
    vmem_needed = (V * D * tok_table.dtype.itemsize                     # token table
                   + (S_pad + 2) * D * 4                                # pos slab + seg rows
                   + 2 * T * D * jnp.dtype(out_dtype).itemsize          # out tiles (2-buf)
                   + 2 * T * 4                                          # seg-id tiles (2-buf)
                   + T * D * 4)                                         # f32 scratch
    vmem_limit = int(min(100 * 1024 * 1024, max(vmem_needed + (4 << 20), 16 << 20)))

    out = pl.pallas_call(
        _bert_emb_kernel,
        out_shape=jax.ShapeDtypeStruct((B, S_pad, D), out_dtype),
        grid_spec=pltpu.PrefetchScalarGridSpec(
            num_scalar_prefetch=1,                       # token ids -> SMEM
            grid=(B, n_s),
            in_specs=[
                # token-type ids: (T, 1) VMEM block per grid step (for the blend)
                pl.BlockSpec((None, T, 1), lambda b, s, *_: (b, s, 0)),
                # resident, single-buffered whole-array VMEM operands
                pl.BlockSpec(memory_space=pltpu.MemorySpace.VMEM),      # token table
                pl.BlockSpec(memory_space=pltpu.MemorySpace.VMEM),      # seg row 0
                pl.BlockSpec(memory_space=pltpu.MemorySpace.VMEM),      # seg row 1
                pl.BlockSpec(memory_space=pltpu.MemorySpace.VMEM),      # position slab
            ],
            # lane-dense, sublane-aligned (T, D) output tile per grid step
            out_specs=pl.BlockSpec((None, T, D), lambda b, s, *_: (b, s, 0)),
            scratch_shapes=[pltpu.VMEM((T, D), jnp.float32)],
        ),
        compiler_params=pltpu.CompilerParams(
            dimension_semantics=("parallel", "parallel"),
            vmem_limit_bytes=vmem_limit,
        ),
    )(tok_ids, seg_f, tok_table, seg0, seg1, pos_used)

    if pad:
        out = out[:, :S, :]
    return out


if __name__ == "__main__":
    # Small, module-consistent shapes.
    vocab_size = 64
    d_model = 128
    max_seq_len = 32
    batch, seq = 2, 8

    key = jax.random.PRNGKey(0)
    k_tok, k_seg, k_pos, k_ids, k_types = jax.random.split(key, 5)

    # nn.Embedding default init: N(0, 1); PosEmb init: randn * 0.02.
    tok_table = jax.random.normal(k_tok, (vocab_size, d_model), dtype=jnp.float32)
    seg_table = jax.random.normal(k_seg, (vocab_size, d_model), dtype=jnp.float32)
    pos_table = (0.02 * jax.random.normal(k_pos, (max_seq_len, d_model))).astype(jnp.float32)

    input_ids = jax.random.randint(k_ids, (batch, seq), 0, vocab_size, dtype=jnp.int32)
    token_type_ids = jax.random.randint(k_types, (batch, seq), 0, 2, dtype=jnp.int32)

    out = bert_emb_forward(input_ids, token_type_ids, tok_table, seg_table, pos_table)
    out = jax.block_until_ready(out)

    # Reference: token + segment + position embeddings (dropout is identity in eval).
    ref = (jnp.take(tok_table, input_ids, axis=0)
           + jnp.take(seg_table, token_type_ids, axis=0)
           + pos_table[:seq][None, :, :])

    assert out.shape == (batch, seq, d_model)
    assert out.dtype == jnp.float32
    assert jnp.allclose(out, ref, atol=1e-6), "BertEmb Pallas kernel mismatch"

    print("KERNEL_OK")
</pallas_src>

<mosaic_0001>
module attributes {stable_mosaic.version = 11 : i64} {
  func.func @_bert_emb_kernel(%arg0: i32, %arg1: i32, %arg2: memref<2x8xi32, #tpu.memory_space<smem>>, %arg3: memref<1x8x1xf32, #tpu.memory_space<vmem>>, %arg4: memref<64x128xf32, #tpu.memory_space<vmem>>, %arg5: memref<1x128xf32, #tpu.memory_space<vmem>>, %arg6: memref<1x128xf32, #tpu.memory_space<vmem>>, %arg7: memref<8x128xf32, #tpu.memory_space<vmem>>, %arg8: memref<1x8x128xf32, #tpu.memory_space<vmem>>, %arg9: memref<8x128xf32, #tpu.memory_space<vmem>>) attributes {dimension_semantics = [#tpu.dimension_semantics<parallel>, #tpu.dimension_semantics<parallel>], iteration_bounds = array<i64: 2, 1>, scalar_prefetch = 1 : i64, scratch_operands = 1 : i64, tpu.core_type = #tpu.core_type<tc>, window_params = [{transform_indices = @transform_0, window_bounds = array<i64: 1, 8, 1>}, {pipeline_mode = #tpu.pipeline_mode<synchronous>, transform_indices = @transform_1, window_bounds = array<i64: 64, 128>}, {pipeline_mode = #tpu.pipeline_mode<synchronous>, transform_indices = @transform_2, window_bounds = array<i64: 1, 128>}, {pipeline_mode = #tpu.pipeline_mode<synchronous>, transform_indices = @transform_3, window_bounds = array<i64: 1, 128>}, {pipeline_mode = #tpu.pipeline_mode<synchronous>, transform_indices = @transform_4, window_bounds = array<i64: 8, 128>}, {transform_indices = @transform_5, window_bounds = array<i64: 1, 8, 128>}]} {
    %c8_i32 = arith.constant 8 : i32
    %0 = arith.muli %arg1, %c8_i32 : i32
    %1 = tpu.assume_multiple %0, 8 : i32
    %c0_i32 = arith.constant 0 : i32
    %c8_i32_0 = arith.constant 8 : i32
    %2 = arith.muli %c0_i32, %c8_i32_0 : i32
    %3 = tpu.assume_multiple %2, 8 : i32
    %4 = arith.addi %1, %3 : i32
    %c0_i32_1 = arith.constant 0 : i32
    %5 = arith.addi %4, %c0_i32_1 : i32
    %6 = arith.index_cast %arg0 : i32 to index
    %7 = arith.index_cast %5 : i32 to index
    %8 = memref.load %arg2[%6, %7] : memref<2x8xi32, #tpu.memory_space<smem>>
    %9 = arith.index_cast %8 : i32 to index
    %c0 = arith.constant 0 : index
    %10 = vector.load %arg4[%9, %c0] : memref<64x128xf32, #tpu.memory_space<vmem>>, vector<1x128xf32>
    %11 = arith.addi %1, %3 : i32
    %c1_i32 = arith.constant 1 : i32
    %12 = arith.addi %11, %c1_i32 : i32
    %13 = arith.index_cast %arg0 : i32 to index
    %14 = arith.index_cast %12 : i32 to index
    %15 = memref.load %arg2[%13, %14] : memref<2x8xi32, #tpu.memory_space<smem>>
    %16 = arith.index_cast %15 : i32 to index
    %c0_2 = arith.constant 0 : index
    %17 = vector.load %arg4[%16, %c0_2] : memref<64x128xf32, #tpu.memory_space<vmem>>, vector<1x128xf32>
    %18 = arith.addi %1, %3 : i32
    %c2_i32 = arith.constant 2 : i32
    %19 = arith.addi %18, %c2_i32 : i32
    %20 = arith.index_cast %arg0 : i32 to index
    %21 = arith.index_cast %19 : i32 to index
    %22 = memref.load %arg2[%20, %21] : memref<2x8xi32, #tpu.memory_space<smem>>
    %23 = arith.index_cast %22 : i32 to index
    %c0_3 = arith.constant 0 : index
    %24 = vector.load %arg4[%23, %c0_3] : memref<64x128xf32, #tpu.memory_space<vmem>>, vector<1x128xf32>
    %25 = arith.addi %1, %3 : i32
    %c3_i32 = arith.constant 3 : i32
    %26 = arith.addi %25, %c3_i32 : i32
    %27 = arith.index_cast %arg0 : i32 to index
    %28 = arith.index_cast %26 : i32 to index
    %29 = memref.load %arg2[%27, %28] : memref<2x8xi32, #tpu.memory_space<smem>>
    %30 = arith.index_cast %29 : i32 to index
    %c0_4 = arith.constant 0 : index
    %31 = vector.load %arg4[%30, %c0_4] : memref<64x128xf32, #tpu.memory_space<vmem>>, vector<1x128xf32>
    %32 = arith.addi %1, %3 : i32
    %c4_i32 = arith.constant 4 : i32
    %33 = arith.addi %32, %c4_i32 : i32
    %34 = arith.index_cast %arg0 : i32 to index
    %35 = arith.index_cast %33 : i32 to index
    %36 = memref.load %arg2[%34, %35] : memref<2x8xi32, #tpu.memory_space<smem>>
    %37 = arith.index_cast %36 : i32 to index
    %c0_5 = arith.constant 0 : index
    %38 = vector.load %arg4[%37, %c0_5] : memref<64x128xf32, #tpu.memory_space<vmem>>, vector<1x128xf32>
    %39 = arith.addi %1, %3 : i32
    %c5_i32 = arith.constant 5 : i32
    %40 = arith.addi %39, %c5_i32 : i32
    %41 = arith.index_cast %arg0 : i32 to index
    %42 = arith.index_cast %40 : i32 to index
    %43 = memref.load %arg2[%41, %42] : memref<2x8xi32, #tpu.memory_space<smem>>
    %44 = arith.index_cast %43 : i32 to index
    %c0_6 = arith.constant 0 : index
    %45 = vector.load %arg4[%44, %c0_6] : memref<64x128xf32, #tpu.memory_space<vmem>>, vector<1x128xf32>
    %46 = arith.addi %1, %3 : i32
    %c6_i32 = arith.constant 6 : i32
    %47 = arith.addi %46, %c6_i32 : i32
    %48 = arith.index_cast %arg0 : i32 to index
    %49 = arith.index_cast %47 : i32 to index
    %50 = memref.load %arg2[%48, %49] : memref<2x8xi32, #tpu.memory_space<smem>>
    %51 = arith.index_cast %50 : i32 to index
    %c0_7 = arith.constant 0 : index
    %52 = vector.load %arg4[%51, %c0_7] : memref<64x128xf32, #tpu.memory_space<vmem>>, vector<1x128xf32>
    %53 = arith.addi %1, %3 : i32
    %c7_i32 = arith.constant 7 : i32
    %54 = arith.addi %53, %c7_i32 : i32
    %55 = arith.index_cast %arg0 : i32 to index
    %56 = arith.index_cast %54 : i32 to index
    %57 = memref.load %arg2[%55, %56] : memref<2x8xi32, #tpu.memory_space<smem>>
    %58 = arith.index_cast %57 : i32 to index
    %c0_8 = arith.constant 0 : index
    %59 = vector.load %arg4[%58, %c0_8] : memref<64x128xf32, #tpu.memory_space<vmem>>, vector<1x128xf32>
    %60 = tpu.concatenate %10, %17, %24, %31, %38, %45, %52, %59 in 0 : vector<1x128xf32>, vector<1x128xf32>, vector<1x128xf32>, vector<1x128xf32>, vector<1x128xf32>, vector<1x128xf32>, vector<1x128xf32>, vector<1x128xf32> -> vector<8x128xf32>
    %61 = arith.index_cast %3 : i32 to index
    %c0_9 = arith.constant 0 : index
    %62 = vector.load %arg9[%61, %c0_9] : memref<8x128xf32, #tpu.memory_space<vmem>>, vector<8x128xf32>
    tpu.vector_store %arg9[%61, %c0_9], %60 {strides = array<i32>} : memref<8x128xf32, #tpu.memory_space<vmem>>, vector<8x128xf32>,
    %c1_i32_10 = arith.constant 1 : i32
    %c0_11 = arith.constant 0 : index
    %c0_12 = arith.constant 0 : index
    %c0_13 = arith.constant 0 : index
    %63 = vector.load %arg3[%c0_11, %c0_12, %c0_13] : memref<1x8x1xf32, #tpu.memory_space<vmem>>, vector<1x8x1xf32>
    %64 = vector.shape_cast %63 : vector<1x8x1xf32> to vector<8x1xf32>
    %c0_14 = arith.constant 0 : index
    %c0_15 = arith.constant 0 : index
    %65 = vector.load %arg5[%c0_14, %c0_15] : memref<1x128xf32, #tpu.memory_space<vmem>>, vector<1x128xf32>
    %cst = arith.constant 1.000000e+00 : f32
    %66 = vector.broadcast %cst : f32 to vector<8x1xf32>
    %67 = arith.subf %66, %64 : vector<8x1xf32>
    %68 = vector.broadcast %65 : vector<1x128xf32> to vector<8x128xf32>
    %69 = vector.broadcast %67 : vector<8x1xf32> to vector<8x128xf32>
    %70 = arith.mulf %68, %69 : vector<8x128xf32>
    %c0_16 = arith.constant 0 : index
    %c0_17 = arith.constant 0 : index
    %71 = vector.load %arg6[%c0_16, %c0_17] : memref<1x128xf32, #tpu.memory_space<vmem>>, vector<1x128xf32>
    %72 = vector.broadcast %71 : vector<1x128xf32> to vector<8x128xf32>
    %73 = vector.broadcast %64 : vector<8x1xf32> to vector<8x128xf32>
    %74 = arith.mulf %72, %73 : vector<8x128xf32>
    %75 = arith.addf %70, %74 : vector<8x128xf32>
    %76 = arith.index_cast %1 : i32 to index
    %c0_18 = arith.constant 0 : index
    %77 = vector.load %arg7[%76, %c0_18] : memref<8x128xf32, #tpu.memory_space<vmem>>, vector<8x128xf32>
    %c0_19 = arith.constant 0 : index
    %c0_20 = arith.constant 0 : index
    %78 = vector.load %arg9[%c0_19, %c0_20] : memref<8x128xf32, #tpu.memory_space<vmem>>, vector<8x128xf32>
    %79 = arith.addf %78, %75 : vector<8x128xf32>
    %80 = arith.addf %79, %77 : vector<8x128xf32>
    %c0_21 = arith.constant 0 : index
    %c0_22 = arith.constant 0 : index
    %c0_23 = arith.constant 0 : index
    %81 = vector.load %arg8[%c0_21, %c0_22, %c0_23] : memref<1x8x128xf32, #tpu.memory_space<vmem>>, vector<1x8x128xf32>
    %82 = vector.shape_cast %81 : vector<1x8x128xf32> to vector<8x128xf32>
    %83 = vector.shape_cast %80 : vector<8x128xf32> to vector<1x8x128xf32>
    tpu.vector_store %arg8[%c0_21, %c0_22, %c0_23], %83 {strides = array<i32>} : memref<1x8x128xf32, #tpu.memory_space<vmem>>, vector<1x8x128xf32>,
    return
  }
  func.func @transform_0(%arg0: i32, %arg1: i32, %arg2: memref<2x8xi32, #tpu.memory_space<smem>>) -> (i32, i32, i32) {
    %c0_i32 = arith.constant 0 : i32
    %c0_i32_0 = arith.constant 0 : i32
    return %arg0, %arg1, %c0_i32 : i32, i32, i32
  }
  func.func @transform_1(%arg0: i32, %arg1: i32, %arg2: memref<2x8xi32, #tpu.memory_space<smem>>) -> (i32, i32) {
    %c0_i32 = arith.constant 0 : i32
    %c0_i32_0 = arith.constant 0 : i32
    %c0_i32_1 = arith.constant 0 : i32
    return %c0_i32, %c0_i32_0 : i32, i32
  }
  func.func @transform_2(%arg0: i32, %arg1: i32, %arg2: memref<2x8xi32, #tpu.memory_space<smem>>) -> (i32, i32) {
    %c0_i32 = arith.constant 0 : i32
    %c0_i32_0 = arith.constant 0 : i32
    %c0_i32_1 = arith.constant 0 : i32
    return %c0_i32, %c0_i32_0 : i32, i32
  }
  func.func @transform_3(%arg0: i32, %arg1: i32, %arg2: memref<2x8xi32, #tpu.memory_space<smem>>) -> (i32, i32) {
    %c0_i32 = arith.constant 0 : i32
    %c0_i32_0 = arith.constant 0 : i32
    %c0_i32_1 = arith.constant 0 : i32
    return %c0_i32, %c0_i32_0 : i32, i32
  }
  func.func @transform_4(%arg0: i32, %arg1: i32, %arg2: memref<2x8xi32, #tpu.memory_space<smem>>) -> (i32, i32) {
    %c0_i32 = arith.constant 0 : i32
    %c0_i32_0 = arith.constant 0 : i32
    %c0_i32_1 = arith.constant 0 : i32
    return %c0_i32, %c0_i32_0 : i32, i32
  }
  func.func @transform_5(%arg0: i32, %arg1: i32, %arg2: memref<2x8xi32, #tpu.memory_space<smem>>) -> (i32, i32, i32) {
    %c0_i32 = arith.constant 0 : i32
    %c0_i32_0 = arith.constant 0 : i32
    return %arg0, %arg1, %c0_i32 : i32, i32, i32
  }
}

</mosaic_0001>

<llo_original>
// kernel: tpu_custom_call.1
$region0: #{tpu_custom_call.1}
  #allocation0 [shape = 'u32[]', space=smem, size = 0x4, offset = 0x4, fixed_abs, tag = 'smem constant byte address 0x4 - core index']
  #allocation1 [shape = 'u32[144,128]{1,0:T(1,128)}', space=vmem, size = 0x12000, scoped, tag = 'internal scratch']
  #allocation2 [shape = 'f32[8,128]{1,0:T(8,128)}', space=vmem, size = 0x1000, scoped, tag = 'scratch operand']
  #allocation3 [shape = 's32[1]{0}', space=sflag, size = 0x4, scoped, tag = 'scoped memory for tpu_custom_call.1']
  #allocation4 [shape = 'u8[1024]{0}', space=smem, size = 0x400, scoped, tag = 'prefetched SMEM operand 0']
  %s0 = inlined_call_operand.vmem [shape: s32[2,8], index: 0, kind: input, shape index: {}]
  %s1 = inlined_call_operand.vmem [shape: f32[2,8,1], index: 1, kind: input, shape index: {}]
  %s2 = inlined_call_operand.hbm [shape: f32[64,128], index: 2, kind: input, shape index: {}]
  %s3 = inlined_call_operand.vmem [shape: f32[1,128], index: 3, kind: input, shape index: {}]
  %s4 = inlined_call_operand.vmem [shape: f32[1,128], index: 4, kind: input, shape index: {}]
  %s5 = inlined_call_operand.vmem [shape: f32[8,128], index: 5, kind: input, shape index: {}]
  %s6 = inlined_call_operand.hbm [shape: f32[2,8,128], index: 6, kind: output, shape index: {}]
  %s7 = sld [smem:[#allocation0]]
  $region57: #{tpu_custom_call.1} parent=0
    _
  %s9 = ssub.s32 1, %s7
  %s10 = scalar_select 0, %s9, %s7
  %s11 = sshll.u32 %s0, 4
  %s12 = int_to_ptr.vmem [resolvable:$true] %s11
  %14 = dma.vmem_to_smem %s12, 32, [#allocation4], [#allocation3]
  %15 = dma.done [#allocation3], 32
  %16 = sfence
  $region1: #{tpu_custom_call.1} parent=0
    #allocation5 [shape = 'u8[32768]{0}', space=vmem, size = 0x8000, scoped, tag = 'input window, operand 2, single buffered']
    #allocation6 [shape = 's32[2]{0}', space=sflag, size = 0x8, scoped, tag = 'scoped memory for tpu_custom_call.1']
    #allocation7 [shape = 's32[2]{0}', space=sflag, size = 0x8, scoped, tag = 'scoped memory for tpu_custom_call.1']
    #allocation8 [shape = 'u8[8192]{0}', space=vmem, size = 0x2000, scoped, tag = 'output window, operand 0']
    %17 = vsyncpa [#allocation6], 0
    %18 = vsyncpa [#allocation7], 0
    %s19 = scalar_lea.sflag [#allocation7], 1
    %20 = vsyncpa %s19, 0
    loop: start=0, step=1, limit=4
    $region2: #{tpu_custom_call.1} parent=1 // loop_pre_header
      _
    $region3: #{tpu_custom_call.1} parent=1 // loop_header
      %s22 = sphi 0, %s26
      %p23 = scmp.ge.s32.totalorder %s22, 4
      %s29 = sphi 0, %s41
      %s30 = sphi 0, %s37
      %s31 = sphi 0, %s29
      %s32 = sphi 0, %s30
      %s33 = sphi 0, %s31
      %s34 = sphi 0, %s32
      %s46 = sphi 0, %s48
      %s49 = sphi 0, %s46
      %s50 = sphi 0, %s49
      %s66 = sphi 0, %s50
      %s70 = sphi 0, %s70
      %s72 = sphi 0, %s70
      %s73 = sphi 0, %s72
      %s87 = sphi 0, %s73
      %s91 = sphi 0, %s91
      %s93 = sphi 0, %s91
      %s94 = sphi 0, %s93
      %s108 = sphi 0, %s94
      %s112 = sphi 0, %s112
      %s114 = sphi 0, %s112
      %s115 = sphi 0, %s114
      %s129 = sphi 0, %s115
      %s133 = sphi 0, %s133
      %s135 = sphi 0, %s133
      %s136 = sphi 0, %s135
      %s150 = sphi 0, %s136
      %s158 = sphi 0, %s160
      %s161 = sphi 0, %s158
      %s162 = sphi 0, %s161
      %s178 = sphi 0, %s162
    $region4: #{tpu_custom_call.1} parent=1 // loop_header_branch
      %25 = sbr.rel (%p23) target = $region8
    $region5: #{tpu_custom_call.1} parent=1 // loop_body
      %s27 = ssub.s32 %s22, 1
      %s28 = ssub.s32 %s22, 2
      %s35 = sadd.s32 1, %s30
      %p36 = scmp.ge.s32.totalorder %s35, 1
      %s37 = scalar_select %p36, 0, %s35
      %s38 = sadd.s32 1, %s29
      %s39 = scalar_select %p36, %s38, %s29
      %p40 = scmp.ge.s32.totalorder %s39, 2
      %s41 = scalar_select %p40, 0, %s39
      %s42 = ssub.s32 %s29, %s41
      %s43 = ssub.s32 %s30, %s37
      %s44 = sor.u32 %s42, %s43
      %p45 = scmp.eq.s32.totalorder %s44, 0
      %s47 = sadd.s32 %s46, 1
      %s48 = scalar_select %p45, %s46, %s47
      %p51 = pneg %p45
      %p52 = scmp.eq.s32.totalorder %s22, 1
      %p53 = por %p51, %p52
      %p54 = scmp.ne.s32.totalorder %s46, %s49
      %p55 = scmp.eq.s32.totalorder %s22, 0
      %p56 = por %p54, %p55
      %p57 = scmp.ne.s32.totalorder %s46, %s49
      %p58 = scmp.eq.s32.totalorder %s27, 1
      %p59 = por %p57, %p58
      %p60 = scmp.ne.s32.totalorder %s49, %s50
      %p61 = scmp.eq.s32.totalorder %s27, 0
      %p62 = por %p60, %p61
      %p63 = scmp.ne.s32.totalorder %s49, %s50
      %p64 = scmp.eq.s32.totalorder %s28, 1
      %p65 = por %p63, %p64
      %p67 = scmp.ne.s32.totalorder %s50, %s66
      %p68 = scmp.eq.s32.totalorder %s28, 0
      %p69 = por %p67, %p68
      %s71 = sadd.s32 %s70, 1
      %p74 = scmp.eq.s32.totalorder %s22, 1
      %p75 = scmp.ne.s32.totalorder %s70, %s72
      %p76 = scmp.eq.s32.totalorder %s22, 0
      %p77 = por %p75, %p76
      %p78 = scmp.ne.s32.totalorder %s70, %s72
      %p79 = scmp.eq.s32.totalorder %s27, 1
      %p80 = por %p78, %p79
      %p81 = scmp.ne.s32.totalorder %s72, %s73
      %p82 = scmp.eq.s32.totalorder %s27, 0
      %p83 = por %p81, %p82
      %p84 = scmp.ne.s32.totalorder %s72, %s73
      %p85 = scmp.eq.s32.totalorder %s28, 1
      %p86 = por %p84, %p85
      %p88 = scmp.ne.s32.totalorder %s73, %s87
      %p89 = scmp.eq.s32.totalorder %s28, 0
      %p90 = por %p88, %p89
      %s92 = sadd.s32 %s91, 1
      %p95 = scmp.eq.s32.totalorder %s22, 1
      %p96 = scmp.ne.s32.totalorder %s91, %s93
      %p97 = scmp.eq.s32.totalorder %s22, 0
      %p98 = por %p96, %p97
      %p99 = scmp.ne.s32.totalorder %s91, %s93
      %p100 = scmp.eq.s32.totalorder %s27, 1
      %p101 = por %p99, %p100
      %p102 = scmp.ne.s32.totalorder %s93, %s94
      %p103 = scmp.eq.s32.totalorder %s27, 0
      %p104 = por %p102, %p103
      %p105 = scmp.ne.s32.totalorder %s93, %s94
      %p106 = scmp.eq.s32.totalorder %s28, 1
      %p107 = por %p105, %p106
      %p109 = scmp.ne.s32.totalorder %s94, %s108
      %p110 = scmp.eq.s32.totalorder %s28, 0
      %p111 = por %p109, %p110
      %s113 = sadd.s32 %s112, 1
      %p116 = scmp.eq.s32.totalorder %s22, 1
      %p117 = scmp.ne.s32.totalorder %s112, %s114
      %p118 = scmp.eq.s32.totalorder %s22, 0
      %p119 = por %p117, %p118
      %p120 = scmp.ne.s32.totalorder %s112, %s114
      %p121 = scmp.eq.s32.totalorder %s27, 1
      %p122 = por %p120, %p121
      %p123 = scmp.ne.s32.totalorder %s114, %s115
      %p124 = scmp.eq.s32.totalorder %s27, 0
      %p125 = por %p123, %p124
      %p126 = scmp.ne.s32.totalorder %s114, %s115
      %p127 = scmp.eq.s32.totalorder %s28, 1
      %p128 = por %p126, %p127
      %p130 = scmp.ne.s32.totalorder %s115, %s129
      %p131 = scmp.eq.s32.totalorder %s28, 0
      %p132 = por %p130, %p131
      %s134 = sadd.s32 %s133, 1
      %p137 = scmp.eq.s32.totalorder %s22, 1
      %p138 = scmp.ne.s32.totalorder %s133, %s135
      %p139 = scmp.eq.s32.totalorder %s22, 0
      %p140 = por %p138, %p139
      %p141 = scmp.ne.s32.totalorder %s133, %s135
      %p142 = scmp.eq.s32.totalorder %s27, 1
      %p143 = por %p141, %p142
      %p144 = scmp.ne.s32.totalorder %s135, %s136
      %p145 = scmp.eq.s32.totalorder %s27, 0
      %p146 = por %p144, %p145
      %p147 = scmp.ne.s32.totalorder %s135, %s136
      %p148 = scmp.eq.s32.totalorder %s28, 1
      %p149 = por %p147, %p148
      %p151 = scmp.ne.s32.totalorder %s136, %s150
      %p152 = scmp.eq.s32.totalorder %s28, 0
      %p153 = por %p151, %p152
      %s154 = ssub.s32 %s29, %s41
      %s155 = ssub.s32 %s30, %s37
      %s156 = sor.u32 %s154, %s155
      %p157 = scmp.eq.s32.totalorder %s156, 0
      %s159 = sadd.s32 %s158, 1
      %s160 = scalar_select %p157, %s158, %s159
      %p163 = pneg %p157
      %p164 = scmp.eq.s32.totalorder %s22, 1
      %p165 = por %p163, %p164
      %p166 = scmp.ne.s32.totalorder %s158, %s161
      %p167 = scmp.eq.s32.totalorder %s22, 0
      %p168 = por %p166, %p167
      %p169 = scmp.ne.s32.totalorder %s158, %s161
      %p170 = scmp.eq.s32.totalorder %s27, 1
      %p171 = por %p169, %p170
      %p172 = scmp.ne.s32.totalorder %s161, %s162
      %p173 = scmp.eq.s32.totalorder %s27, 0
      %p174 = por %p172, %p173
      %p175 = scmp.ne.s32.totalorder %s161, %s162
      %p176 = scmp.eq.s32.totalorder %s28, 1
      %p177 = por %p175, %p176
      %p179 = scmp.ne.s32.totalorder %s162, %s178
      %p180 = scmp.eq.s32.totalorder %s28, 0
      %p181 = por %p179, %p180
      %p182 = scmp.le.s32.totalorder 1, %s22
      %p183 = scmp.lt.s32.totalorder %s22, 3
      %p184 = pnand %p182, %p183
      %p185 = pneg %p184
      // Predicated region
      $region9: #{tpu_custom_call.1} parent=5 // pred_check
        _
      $region10: #{tpu_custom_call.1} parent=5 // pred_check_branch
        %187 = sbr.rel (%p184) target = $region12
      $region11: #{tpu_custom_call.1} parent=5 // pred_region
        %s188 = ssub.s32 %s22, 1
        // Predicated region
        $region13: #{tpu_custom_call.1} parent=11 // pred_check
          %p189 = pneg %p83
        $region14: #{tpu_custom_call.1} parent=11 // pred_check_branch
          %191 = sbr.rel (%p189) target = $region16
        $region15: #{tpu_custom_call.1} parent=11 // pred_region
          %s193 = ssub.s32 1024, 1024
          %194 = vsyncadd [#allocation6], %s193
          %s195 = sshll.u32 [#allocation5], 4
          %s196 = int_to_ptr.vmem [resolvable:$true] %s195
          %201 = dma.hbm_to_vmem [thread:$0]  %s2, 1024, %s196, [#allocation6], 128, 128, 8
        $region16: #{tpu_custom_call.1} parent=11 // pred_fallthru
          _
        // Predicated region
        $region17: #{tpu_custom_call.1} parent=11 // pred_check
          %p202 = pneg %p104
        $region18: #{tpu_custom_call.1} parent=11 // pred_check_branch
          %204 = sbr.rel (%p202) target = $region20
        $region19: #{tpu_custom_call.1} parent=11 // pred_region
          _
        $region20: #{tpu_custom_call.1} parent=11 // pred_fallthru
          _
        // Predicated region
        $region21: #{tpu_custom_call.1} parent=11 // pred_check
          %p205 = pneg %p125
        $region22: #{tpu_custom_call.1} parent=11 // pred_check_branch
          %207 = sbr.rel (%p205) target = $region24
        $region23: #{tpu_custom_call.1} parent=11 // pred_region
          _
        $region24: #{tpu_custom_call.1} parent=11 // pred_fallthru
          _
        // Predicated region
        $region25: #{tpu_custom_call.1} parent=11 // pred_check
          %p208 = pneg %p146
        $region26: #{tpu_custom_call.1} parent=11 // pred_check_branch
          %210 = sbr.rel (%p208) target = $region28
        $region27: #{tpu_custom_call.1} parent=11 // pred_region
          _
        $region28: #{tpu_custom_call.1} parent=11 // pred_fallthru
          _
      $region12: #{tpu_custom_call.1} parent=5 // pred_fallthru
        _
      %p211 = scmp.lt.s32.totalorder %s22, 2
      // Predicated region
      $region29: #{tpu_custom_call.1} parent=5 // pred_check
        %p212 = pneg %p211
      $region30: #{tpu_custom_call.1} parent=5 // pred_check_branch
        %214 = sbr.rel (%p212) target = $region32
      $region31: #{tpu_custom_call.1} parent=5 // pred_region
        // Predicated region
        $region33: #{tpu_custom_call.1} parent=31 // pred_check
          %p215 = pneg %p56
        $region34: #{tpu_custom_call.1} parent=31 // pred_check_branch
          %217 = sbr.rel (%p215) target = $region36
        $region35: #{tpu_custom_call.1} parent=31 // pred_region
          %p218 = scmp.lt.s32.totalorder %s29, 1
          %s219 = scalar_select %p218, %s29, 1
          %p220 = scmp.lt.s32.totalorder %s30, 0
          %s221 = scalar_select %p220, %s30, 0
          %s222 = sadd.s32 %s221, %s219
          %s223 = smul.addr %s222, 8
          %s224 = scalar_lea.vmem %s1, %s223
        $region36: #{tpu_custom_call.1} parent=31 // pred_fallthru
          _
      $region32: #{tpu_custom_call.1} parent=5 // pred_fallthru
        _
      %p225 = scmp.le.s32.totalorder 1, %s22
      %p226 = scmp.lt.s32.totalorder %s22, 3
      %p227 = pnand %p225, %p226
      %p228 = pneg %p227
      // Predicated region
      $region37: #{tpu_custom_call.1} parent=5 // pred_check
        _
      $region38: #{tpu_custom_call.1} parent=5 // pred_check_branch
        %230 = sbr.rel (%p227) target = $region40
      $region39: #{tpu_custom_call.1} parent=5 // pred_region
        %s231 = ssub.s32 %s22, 1
        // Predicated region
        $region41: #{tpu_custom_call.1} parent=39 // pred_check
          %p232 = pneg %p83
        $region42: #{tpu_custom_call.1} parent=39 // pred_check_branch
          %234 = sbr.rel (%p232) target = $region44
        $region43: #{tpu_custom_call.1} parent=39 // pred_region
          %235 = dma.done [#allocation6], 1024
        $region44: #{tpu_custom_call.1} parent=39 // pred_fallthru
          _
        %p236 = scmp.lt.s32.totalorder %s31, 1
        %s237 = scalar_select %p236, %s31, 1
        %p238 = scmp.lt.s32.totalorder %s32, 0
        %s239 = scalar_select %p238, %s32, 0
        %s240 = sadd.s32 %s239, %s237
        %s241 = smul.addr %s240, 8
        %s242 = scalar_lea.vmem %s1, %s241
        %p243 = pneg %p62
        %p244 = pneg %p59
        %p245 = pneg %p83
        %p246 = pneg %p80
        %p247 = pneg %p104
        %p248 = pneg %p101
        %p249 = pneg %p125
        %p250 = pneg %p122
        %p251 = pneg %p146
        %p252 = pneg %p143
        %p253 = pneg %p174
        %p254 = pneg %p171
        %s255 = sand.u32 %s161, 1
        %s256 = scalar_lea.sflag [#allocation7], %s255
        %s257 = sand.u32 %s161, 1
        %s258 = smul.addr %s257, 8
        %s259 = scalar_lea.vmem [#allocation8], %s258
        %p260 = scmp.lt.s32.totalorder %s31, 1
        %s261 = scalar_select %p260, %s31, 1
        %p262 = scmp.lt.s32.totalorder %s32, 0
        %s263 = scalar_select %p262, %s32, 0
        %s264 = sadd.s32 %s263, %s261
        %s265 = smul.addr %s264, 8
        %s266 = scalar_lea.vmem %s1, %s265
        %s267 = smul.u32 %s32, 8
        %s268 = sadd.s32 %s267, 0
        %s269 = sshra.s32 %s268, 7
        %s270 = sand.u32 %s268, 127
        %s271 = sadd.s32 %s269, %s31
        %s272 = smul.u32 %s271, 128
        %s273 = sshra.s32 %s268, 7
        %s274 = sand.u32 %s268, 127
        %s275 = sadd.s32 %s272, %s274
        %s276 = sld [smem:[#allocation4 + %s275]]
        %s277 = scalar_lea.vmem [#allocation5], %s276
        %v278 = vld [vmem:[%s277] sm:$0x1]
        %s279 = sadd.s32 %s268, 1
        %s280 = sshra.s32 %s279, 7
        %s281 = sand.u32 %s279, 127
        %s282 = sadd.s32 %s280, %s31
        %s283 = smul.u32 %s282, 128
        %s284 = sshra.s32 %s279, 7
        %s285 = sand.u32 %s279, 127
        %s286 = sadd.s32 %s283, %s285
        %s287 = sld [smem:[#allocation4 + %s286]]
        %s288 = scalar_lea.vmem [#allocation5], %s287
        %v289 = vld [vmem:[%s288] sm:$0x1]
        %s290 = sadd.s32 %s268, 2
        %s291 = sshra.s32 %s290, 7
        %s292 = sand.u32 %s290, 127
        %s293 = sadd.s32 %s291, %s31
        %s294 = smul.u32 %s293, 128
        %s295 = sshra.s32 %s290, 7
        %s296 = sand.u32 %s290, 127
        %s297 = sadd.s32 %s294, %s296
        %s298 = sld [smem:[#allocation4 + %s297]]
        %s299 = scalar_lea.vmem [#allocation5], %s298
        %v300 = vld [vmem:[%s299] sm:$0x1]
        %s301 = sadd.s32 %s268, 3
        %s302 = sshra.s32 %s301, 7
        %s303 = sand.u32 %s301, 127
        %s304 = sadd.s32 %s302, %s31
        %s305 = smul.u32 %s304, 128
        %s306 = sshra.s32 %s301, 7
        %s307 = sand.u32 %s301, 127
        %s308 = sadd.s32 %s305, %s307
        %s309 = sld [smem:[#allocation4 + %s308]]
        %s310 = scalar_lea.vmem [#allocation5], %s309
        %v311 = vld [vmem:[%s310] sm:$0x1]
        %s312 = sadd.s32 %s268, 4
        %s313 = sshra.s32 %s312, 7
        %s314 = sand.u32 %s312, 127
        %s315 = sadd.s32 %s313, %s31
        %s316 = smul.u32 %s315, 128
        %s317 = sshra.s32 %s312, 7
        %s318 = sand.u32 %s312, 127
        %s319 = sadd.s32 %s316, %s318
        %s320 = sld [smem:[#allocation4 + %s319]]
        %s321 = scalar_lea.vmem [#allocation5], %s320
        %v322 = vld [vmem:[%s321] sm:$0x1]
        %s323 = sadd.s32 %s268, 5
        %s324 = sshra.s32 %s323, 7
        %s325 = sand.u32 %s323, 127
        %s326 = sadd.s32 %s324, %s31
        %s327 = smul.u32 %s326, 128
        %s328 = sshra.s32 %s323, 7
        %s329 = sand.u32 %s323, 127
        %s330 = sadd.s32 %s327, %s329
        %s331 = sld [smem:[#allocation4 + %s330]]
        %s332 = scalar_lea.vmem [#allocation5], %s331
        %v333 = vld [vmem:[%s332] sm:$0x1]
        %s334 = sadd.s32 %s268, 6
        %s335 = sshra.s32 %s334, 7
        %s336 = sand.u32 %s334, 127
        %s337 = sadd.s32 %s335, %s31
        %s338 = smul.u32 %s337, 128
        %s339 = sshra.s32 %s334, 7
        %s340 = sand.u32 %s334, 127
        %s341 = sadd.s32 %s338, %s340
        %s342 = sld [smem:[#allocation4 + %s341]]
        %s343 = scalar_lea.vmem [#allocation5], %s342
        %v344 = vld [vmem:[%s343] sm:$0x1]
        %s345 = sadd.s32 %s268, 7
        %s346 = sshra.s32 %s345, 7
        %s347 = sand.u32 %s345, 127
        %s348 = sadd.s32 %s346, %s31
        %s349 = smul.u32 %s348, 128
        %s350 = sshra.s32 %s345, 7
        %s351 = sand.u32 %s345, 127
        %s352 = sadd.s32 %s349, %s351
        %s353 = sld [smem:[#allocation4 + %s352]]
        %s354 = scalar_lea.vmem [#allocation5], %s353
        %v355 = vld [vmem:[%s354] sm:$0x1]
        %v357 = vrot.slane %v289, 7
        %v360 = vrot.slane %v300, 6
        %v363 = vrot.slane %v311, 5
        %v366 = vrot.slane %v322, 4
        %v369 = vrot.slane %v333, 3
        %v372 = vrot.slane %v344, 2
        %v375 = vrot.slane %v355, 1
        %vm377 = vcmask 1040384
        %v378 = vsel %vm377, %v278, %v357
        %vm379 = vcmask 1041408
        %v380 = vsel %vm379, %v378, %v360
        %vm381 = vcmask 1042432
        %v382 = vsel %vm381, %v380, %v363
        %vm383 = vcmask 1043456
        %v384 = vsel %vm383, %v382, %v366
        %vm385 = vcmask 1044480
        %v386 = vsel %vm385, %v384, %v369
        %vm387 = vcmask 1045504
        %v388 = vsel %vm387, %v386, %v372
        %vm389 = vcmask 1046528
        %v390 = vsel %vm389, %v388, %v375
        %391 = vst [vmem:[#allocation2] sm:$0xff] %v390
        %v392 = vld [vmem:[%s266] sm:$0xff]
        %v393 = vld [vmem:[%s3] sm:$0x1]
        %v394 = vsub.f32 1.0, %v392
        %v396 = vlaneseq
        %v397 = vshrl.u32 %v396, 7
        %v398 = vsub.s32 0, %v397
        %v399 = vrot.slane %v393, %v398
        %402 = vset.pattern.permute.xlu0 0
        %403 = vperm.xlu0 %402, %v394
        %v404 = vpop.permute.xlu0 %403
        %v406 = vmul.f32 %v399, %v404
        %v407 = vld [vmem:[%s4] sm:$0x1]
        %v409 = vlaneseq
        %v410 = vshrl.u32 %v409, 7
        %v411 = vsub.s32 0, %v410
        %v412 = vrot.slane %v407, %v411
        %415 = vset.pattern.permute.xlu0 0
        %416 = vperm.xlu0 %415, %v392
        %v417 = vpop.permute.xlu0 %416
        %v419 = vmul.f32 %v412, %v417
        %v420 = vadd.f32 %v406, %v419
        %s421 = scalar_lea.vmem %s5, %s267
        %v422 = vld [vmem:[%s421] sm:$0xff]
        %v423 = vld [vmem:[#allocation2] sm:$0xff]
        %v424 = vadd.f32 %v423, %v420
        %v425 = vadd.f32 %v424, %v422
        %426 = vst [vmem:[%s259] sm:$0xff] %v425
        %s427 = sand.u32 %s161, 1
        %s428 = scalar_lea.sflag [#allocation7], %s427
        %s429 = sand.u32 %s161, 1
        %s430 = smul.addr %s429, 8
        %s431 = scalar_lea.vmem [#allocation8], %s430
        // Predicated region
        $region45: #{tpu_custom_call.1} parent=39 // pred_check
          %p432 = pneg %p171
        $region46: #{tpu_custom_call.1} parent=39 // pred_check_branch
          %434 = sbr.rel (%p432) target = $region48
        $region47: #{tpu_custom_call.1} parent=39 // pred_region
          %s436 = ssub.s32 128, 128
          %437 = vsyncadd %s428, %s436
          %s438 = sadd.s32 %s32, %s31
          %s439 = smul.addr %s438, 128
          %s440 = scalar_lea.hbm %s6, %s439
          %s442 = sshll.u32 %s431, 4
          %s443 = int_to_ptr.vmem [resolvable:$true] %s442
          %445 = dma.vmem_to_hbm [thread:$0]  %s443, 128, %s440, %s428
        $region48: #{tpu_custom_call.1} parent=39 // pred_fallthru
          _
      $region40: #{tpu_custom_call.1} parent=5 // pred_fallthru
        _
      %p446 = scmp.le.s32.totalorder 2, %s22
      // Predicated region
      $region49: #{tpu_custom_call.1} parent=5 // pred_check
        %p447 = pneg %p446
      $region50: #{tpu_custom_call.1} parent=5 // pred_check_branch
        %449 = sbr.rel (%p447) target = $region52
      $region51: #{tpu_custom_call.1} parent=5 // pred_region
        %s450 = ssub.s32 %s22, 2
        // Predicated region
        $region53: #{tpu_custom_call.1} parent=51 // pred_check
          %p451 = pneg %p177
        $region54: #{tpu_custom_call.1} parent=51 // pred_check_branch
          %453 = sbr.rel (%p451) target = $region56
        $region55: #{tpu_custom_call.1} parent=51 // pred_region
          %s454 = sand.u32 %s162, 1
          %s455 = scalar_lea.sflag [#allocation7], %s454
          %s456 = sand.u32 %s162, 1
          %s457 = smul.addr %s456, 8
          %s458 = scalar_lea.vmem [#allocation8], %s457
          %459 = dma.done %s455, 128
        $region56: #{tpu_custom_call.1} parent=51 // pred_fallthru
          _
      $region52: #{tpu_custom_call.1} parent=5 // pred_fallthru
        _
    $region6: #{tpu_custom_call.1} parent=1 // loop_footer
      %s26 = sadd.s32 1, %s22
    $region7: #{tpu_custom_call.1} parent=1 // loop_footer_branch
      %21 = sbr.rel target = $region3
    $region8: #{tpu_custom_call.1} parent=1 // loop_exit
      _
    %460 = vsyncpa [#allocation6], 1
    %s461 = scalar_lea.sflag [#allocation6], 1
    %462 = vsyncpa %s461, 1
    %463 = vsyncpa [#allocation7], 1
    %s464 = scalar_lea.sflag [#allocation7], 1
    %465 = vsyncpa %s464, 1

</llo_original>
